<compile_context>
chip_gen: v6e
topology: v6e:2x2x1
jax: 0.10.0
libtpu: 0.0.40
codegen_flags: <defaults>
</compile_context>

<pallas_src>
import math

import jax
import jax.numpy as jnp
from jax.experimental import pallas as pl
from jax.experimental.pallas import tpu as pltpu

_MiB = 1024 * 1024
_GELU_C = math.sqrt(2.0 / math.pi)
_SIG_C = 2.0 * _GELU_C  # 0.5*(1+tanh(z)) == sigmoid(2*z)


# ---------------------------------------------------------------------------
# Kernels
# ---------------------------------------------------------------------------
def _gelu_tanh(h):
    """tanh-approx GELU (f32) via the sigmoid identity: one EUP transcendental."""
    return h * jax.lax.logistic(_SIG_C * (h + 0.044715 * h * h * h))


def _ffn_kernel_acc(x_ref, w1_ref, b1_ref, w2_ref, b2_ref, o_ref, acc_ref):
    # x_ref : (tm, d_model)   w1_ref: (d_model, tf)   b1_ref: (1, tf)
    # w2_ref: (tf, d_model)   b2_ref: (1, d_model)
    # o_ref : (tm, d_model)   acc_ref: (tm, d_model) f32 scratch
    kf = pl.program_id(1)

    @pl.when(kf == 0)
    def _():
        acc_ref[...] = jnp.zeros_like(acc_ref)

    h = jnp.dot(x_ref[...], w1_ref[...], preferred_element_type=jnp.float32)
    h = h + b1_ref[...].astype(jnp.float32)
    g = _gelu_tanh(h)
    acc_ref[...] += jnp.dot(g.astype(w2_ref.dtype), w2_ref[...],
                            preferred_element_type=jnp.float32)

    @pl.when(kf == pl.num_programs(1) - 1)
    def _():
        o_ref[...] = (acc_ref[...] + b2_ref[...].astype(jnp.float32)
                      ).astype(o_ref.dtype)


def _ffn_kernel_single(x_ref, w1_ref, b1_ref, w2_ref, b2_ref, o_ref):
    """Fast path for grid_f == 1: no scratch, no zero-init / copy-out RMW."""
    h = jnp.dot(x_ref[...], w1_ref[...], preferred_element_type=jnp.float32)
    h = h + b1_ref[...].astype(jnp.float32)
    g = _gelu_tanh(h)
    y = jnp.dot(g.astype(w2_ref.dtype), w2_ref[...],
                preferred_element_type=jnp.float32)
    o_ref[...] = (y + b2_ref[...].astype(jnp.float32)).astype(o_ref.dtype)


# ---------------------------------------------------------------------------
# Tiling heuristics
# ---------------------------------------------------------------------------
def _cdiv(a, b):
    return -(-a // b)


def _round_up(x, m):
    return ((x + m - 1) // m) * m


def _sublane_multiple(dtype):
    # Packed sublane tile: 8 rows for 4-byte, 16 for 2-byte, 32 for 1-byte.
    return {4: 8, 2: 16, 1: 32}.get(jnp.dtype(dtype).itemsize, 8)


def _vmem_capacity_bytes():
    try:
        info = pltpu.get_tpu_info()
    except Exception:
        return None
    for name in ("vmem_capacity_bytes", "vmem_bytes", "vmem_size_bytes"):
        v = getattr(info, name, None)
        if isinstance(v, int) and v > 0:
            return v
    return None


def _generation_config():
    """Per-generation tile targets / VMEM budgets (roofline-driven).

    Arithmetic intensity of this kernel is ~ tm FLOP/byte with bf16 weights:
      v7x : 64 MiB VMEM/TC, ~3.2 TB/s HBM -> crossover ~310; 2 TCs/chip.
      v6e : 128 MiB VMEM,   ~1.4 TB/s HBM -> crossover ~640.
      v5e : 128 MiB VMEM,   ~0.8 TB/s HBM -> crossover ~240.
    """
    cap = _vmem_capacity_bytes()
    if cap is not None and cap <= 64 * _MiB:
        # v7x-like: small VMEM, fast HBM, two TensorCores.
        return dict(tm_target=512, tf_target=512, budget=44 * _MiB,
                    limit_cap=max(32 * _MiB, min(56 * _MiB, cap - 8 * _MiB)),
                    two_tiles=True)
    if cap is not None:
        # v5e / v6e: large VMEM, single TensorCore.
        return dict(tm_target=768, tf_target=1024, budget=88 * _MiB,
                    limit_cap=min(100 * _MiB, cap - 16 * _MiB),
                    two_tiles=False)
    # Unknown hardware: conservative (safe on v7x's 64 MiB/TC).
    return dict(tm_target=512, tf_target=512, budget=40 * _MiB,
                limit_cap=48 * _MiB, two_tiles=False)


def _aligned_divisors(n, align=128):
    return [d for d in range(align, n + 1, align) if n % d == 0]


def _pick_ff_tile(d_ff_pad, target):
    if d_ff_pad % 128 != 0:
        return d_ff_pad  # whole axis in one block (grid_f == 1)
    divs = _aligned_divisors(d_ff_pad)
    fits = [d for d in divs if d <= target]
    return max(fits) if fits else min(divs)


def _shrink_ff_tile(d_ff_pad, tf):
    if d_ff_pad % 128 != 0:
        return tf
    smaller = [d for d in _aligned_divisors(d_ff_pad) if d < tf]
    return max(smaller) if smaller else tf


def _pick_token_tile(M, target, sub):
    target = max(sub, (target // sub) * sub)
    if M <= target:
        return _round_up(M, sub)
    # Choose among a few candidates the one minimizing padded-M dead work,
    # preferring larger tiles on ties (fewer weight re-streams).
    cands = sorted({max(sub, (c // sub) * sub)
                    for c in (target, (3 * target) // 4, target // 2, target // 4)},
                   reverse=True)
    best_c, best_pad = None, None
    for c in cands:
        pad = _cdiv(M, c) * c
        if best_pad is None or pad < best_pad:
            best_c, best_pad = c, pad
    return best_c


def _vmem_estimate(tm, tf, d_model, grid_f, x_isize, w_isize):
    io = 2 * 2 * tm * d_model * x_isize            # x + out, double-buffered
    acc = tm * d_model * 4 if grid_f > 1 else 0    # f32 accumulator scratch
    w = 2 * 2 * tf * d_model * w_isize             # W1 + W2 blocks, double-buffered
    b = 2 * (tf + d_model) * 4                     # bias blocks
    return io + acc + w + b


def _fit_tiles(M, d_model, d_ff_pad, cfg, sub, x_isize, w_isize,
               tile_m=None, tile_f=None):
    # ---- d_ff tile --------------------------------------------------------
    tf = tile_f if tile_f is not None else _pick_ff_tile(d_ff_pad,
                                                         max(128, cfg["tf_target"]))
    assert d_ff_pad % tf == 0

    # ---- token tile -------------------------------------------------------
    if tile_m is not None:
        tm = _round_up(min(tile_m, _round_up(M, sub)), sub)
    else:
        tm = _pick_token_tile(M, cfg["tm_target"], sub)
        # v7x: the 'parallel' token axis shards across the two TensorCores;
        # make sure there are at least two token tiles so one core isn't idle.
        if cfg["two_tiles"] and _cdiv(M, tm) < 2 and M > sub:
            tm = _round_up(_cdiv(M, 2), sub)
    tm = max(sub, tm)

    # ---- shrink to the per-generation VMEM budget -------------------------
    while _vmem_estimate(tm, tf, d_model, d_ff_pad // tf,
                         x_isize, w_isize) > cfg["budget"]:
        if tile_f is None:
            tf_small = _shrink_ff_tile(d_ff_pad, tf)
            if tf_small < tf:
                tf = tf_small
                continue
        if tile_m is None and tm > sub:
            tm = max(sub, _round_up(tm // 2, sub))
            continue
        break
    return tm, tf


# ---------------------------------------------------------------------------
# Wrapper
# ---------------------------------------------------------------------------
def feed_forward(x, w1, b1, w2, b2, *, tile_m=None, tile_f=None):
    """FFN forward: gelu_tanh(x @ W1 + b1) @ W2 + b2.

    x: (batch, seq, d_model).  Weights stored (in_features, out_features),
    i.e. y = x @ W (PyTorch Linear stores (out, in); transpose when porting).
    Dropout is the identity (inference path).

    Production note: pass x/W1/W2 in bfloat16 — f32 operands run the MXU well
    below bf16 peak and double weight-DMA bytes.  Accumulation and GELU stay
    in f32 regardless.  (The v7x MXU has no int8 path; an int8-weight variant
    would be v5e/v6e-only.)
    """
    batch, seq, d_model = x.shape
    assert w1.shape[0] == d_model and w2.shape[1] == d_model
    d_ff = w1.shape[1]
    assert w2.shape[0] == d_ff and b1.shape == (d_ff,) and b2.shape == (d_model,)

    M = batch * seq
    sub = _sublane_multiple(x.dtype)
    x_isize = jnp.dtype(x.dtype).itemsize
    w_isize = jnp.dtype(w1.dtype).itemsize
    cfg = _generation_config()

    # Pad d_ff so every d_ff tile is a 128-lane multiple: keeps weight blocks
    # bounded even for oddly-factored d_ff.  Padded W1 cols / b1 / W2 rows are
    # zero and gelu(0) == 0, so the padding contributes nothing.
    if tile_f is not None and tile_f % 128 == 0:
        d_ff_pad = _round_up(d_ff, tile_f)
    elif tile_f is not None:
        assert tile_f == d_ff, "tile_f must be a multiple of 128 or equal d_ff"
        d_ff_pad = d_ff
    else:
        d_ff_pad = _round_up(d_ff, 128)
    if d_ff_pad != d_ff:
        pad_f = d_ff_pad - d_ff
        w1 = jnp.pad(w1, ((0, 0), (0, pad_f)))
        b1 = jnp.pad(b1, ((0, pad_f),))
        w2 = jnp.pad(w2, ((0, pad_f), (0, 0)))

    tm, tf = _fit_tiles(M, d_model, d_ff_pad, cfg, sub, x_isize, w_isize,
                        tile_m=tile_m, tile_f=tile_f)
    grid_m = _cdiv(M, tm)
    grid_f = d_ff_pad // tf
    m_pad = grid_m * tm

    x2d = x.reshape(M, d_model)
    if m_pad != M:
        x2d = jnp.pad(x2d, ((0, m_pad - M), (0, 0)))
    b1_2d = b1.reshape(1, d_ff_pad)
    b2_2d = b2.reshape(1, d_model)

    single = grid_f == 1
    kernel = _ffn_kernel_single if single else _ffn_kernel_acc
    scratch = () if single else (pltpu.VMEM((tm, d_model), jnp.float32),)

    est = _vmem_estimate(tm, tf, d_model, grid_f, x_isize, w_isize)
    vmem_limit = int(min(cfg["limit_cap"],
                         max(32 * _MiB, est + est // 3 + 4 * _MiB)))

    cost = pl.CostEstimate(
        flops=int(4 * m_pad * d_model * d_ff_pad),
        transcendentals=int(m_pad * d_ff_pad),
        bytes_accessed=int(2 * m_pad * d_model * x_isize
                           + grid_m * 2 * d_model * d_ff_pad * w_isize
                           + 4 * (d_ff_pad + d_model)),
    )

    out2d = pl.pallas_call(
        kernel,
        out_shape=jax.ShapeDtypeStruct((m_pad, d_model), x.dtype),
        grid_spec=pltpu.PrefetchScalarGridSpec(
            num_scalar_prefetch=0,
            grid=(grid_m, grid_f),
            in_specs=[
                pl.BlockSpec((tm, d_model), lambda i, kf: (i, 0)),    # x tile
                pl.BlockSpec((d_model, tf), lambda i, kf: (0, kf)),   # W1 cols
                pl.BlockSpec((1, tf), lambda i, kf: (0, kf)),         # b1 chunk
                pl.BlockSpec((tf, d_model), lambda i, kf: (kf, 0)),   # W2 rows
                pl.BlockSpec((1, d_model), lambda i, kf: (0, 0)),     # b2
            ],
            out_specs=pl.BlockSpec((tm, d_model), lambda i, kf: (i, 0)),
            scratch_shapes=scratch,
        ),
        compiler_params=pltpu.CompilerParams(
            dimension_semantics=("parallel", "arbitrary"),
            vmem_limit_bytes=vmem_limit,
        ),
        cost_estimate=cost,
    )(x2d, w1, b1_2d, w2, b2_2d)

    if m_pad != M:
        out2d = out2d[:M]
    return out2d.reshape(batch, seq, d_model)


# ---------------------------------------------------------------------------
# Reference / init / tests
# ---------------------------------------------------------------------------
def _init_params(key, d_model, d_ff):
    """xavier_normal_ weights, uniform(0,1) biases (FeedForward.reset_parameters),
    stored as (in, out)."""
    k1, k2, k3, k4 = jax.random.split(key, 4)
    std1 = math.sqrt(2.0 / (d_model + d_ff))
    std2 = math.sqrt(2.0 / (d_ff + d_model))
    w1 = jax.random.normal(k1, (d_model, d_ff), jnp.float32) * std1
    w2 = jax.random.normal(k2, (d_ff, d_model), jnp.float32) * std2
    b1 = jax.random.uniform(k3, (d_ff,), jnp.float32)
    b2 = jax.random.uniform(k4, (d_model,), jnp.float32)
    return w1, b1, w2, b2


def _reference(x, w1, b1, w2, b2):
    xf = x.astype(jnp.float32)
    h = jnp.einsum("bsd,df->bsf", xf, w1.astype(jnp.float32)) + b1.astype(jnp.float32)
    g = 0.5 * h * (1.0 + jnp.tanh(_GELU_C * (h + 0.044715 * h ** 3)))
    y = jnp.einsum("bsf,fd->bsd", g, w2.astype(jnp.float32)) + b2.astype(jnp.float32)
    return y.astype(x.dtype)


if __name__ == "__main__":
    key = jax.random.PRNGKey(0)
    kx, kp, kx2, kp2, kx3, kp3 = jax.random.split(key, 6)

    # --- Check 1: module-implied shapes (batch=2, seq=8, d_model=32,
    #     d_ff=4*d_model), f32, grid_f==1 fast path. ---
    batch, seq, d_model = 2, 8, 32
    d_ff = 4 * d_model  # 128
    x = jax.random.normal(kx, (batch, seq, d_model), jnp.float32)
    w1, b1, w2, b2 = _init_params(kp, d_model, d_ff)
    out = feed_forward(x, w1, b1, w2, b2)
    jax.block_until_ready(out)
    ref = _reference(x, w1, b1, w2, b2)
    assert out.shape == (batch, seq, d_model)
    assert jnp.allclose(out, ref, atol=1e-4, rtol=1e-4), "mismatch (f32, single)"

    # --- Check 2: d_ff reduction loop (grid_f=2) + token padding (M=12). ---
    b2_, s2_, dm2, df2 = 1, 12, 64, 256
    x_b = jax.random.normal(kx2, (b2_, s2_, dm2), jnp.float32)
    w1b, b1b, w2b, b2b = _init_params(kp2, dm2, df2)
    out_b = feed_forward(x_b, w1b, b1b, w2b, b2b, tile_f=128)
    jax.block_until_ready(out_b)
    ref_b = _reference(x_b, w1b, b1b, w2b, b2b)
    assert out_b.shape == (b2_, s2_, dm2)
    assert jnp.allclose(out_b, ref_b, atol=1e-4, rtol=1e-4), "mismatch (f32, tiled)"

    # --- Check 3: production dtype (bf16 x/W1/W2, f32 biases), exercises the
    #     16-row sublane alignment path. ---
    b3_, s3_, dm3, df3 = 2, 24, 128, 512
    x_c = jax.random.normal(kx3, (b3_, s3_, dm3), jnp.float32).astype(jnp.bfloat16)
    w1c, b1c, w2c, b2c = _init_params(kp3, dm3, df3)
    w1c = w1c.astype(jnp.bfloat16)
    w2c = w2c.astype(jnp.bfloat16)
    out_c = feed_forward(x_c, w1c, b1c, w2c, b2c)
    jax.block_until_ready(out_c)
    ref_c = _reference(x_c, w1c, b1c, w2c, b2c)
    assert out_c.dtype == jnp.bfloat16
    assert jnp.allclose(out_c.astype(jnp.float32), ref_c.astype(jnp.float32),
                        atol=3e-2, rtol=3e-2), "mismatch (bf16)"

    print("KERNEL_OK")
</pallas_src>

<mosaic_0001>
module attributes {stable_mosaic.version = 11 : i64} {
  func.func @_ffn_kernel_single(%arg0: i32, %arg1: i32, %arg2: memref<16x32xf32, #tpu.memory_space<vmem>>, %arg3: memref<32x128xf32, #tpu.memory_space<vmem>>, %arg4: memref<1x128xf32, #tpu.memory_space<vmem>>, %arg5: memref<128x32xf32, #tpu.memory_space<vmem>>, %arg6: memref<1x32xf32, #tpu.memory_space<vmem>>, %arg7: memref<16x32xf32, #tpu.memory_space<vmem>>) attributes {dimension_semantics = [#tpu.dimension_semantics<parallel>, #tpu.dimension_semantics<arbitrary>], iteration_bounds = array<i64: 1, 1>, scalar_prefetch = 0 : i64, scratch_operands = 0 : i64, tpu.core_type = #tpu.core_type<tc>, window_params = [{transform_indices = @transform_0, window_bounds = array<i64: 16, 32>}, {transform_indices = @transform_1, window_bounds = array<i64: 32, 128>}, {transform_indices = @transform_2, window_bounds = array<i64: 1, 128>}, {transform_indices = @transform_3, window_bounds = array<i64: 128, 32>}, {pipeline_mode = #tpu.pipeline_mode<synchronous>, transform_indices = @transform_4, window_bounds = array<i64: 1, 32>}, {transform_indices = @transform_5, window_bounds = array<i64: 16, 32>}]} {
    %c0 = arith.constant 0 : index
    %c0_0 = arith.constant 0 : index
    %0 = vector.load %arg2[%c0, %c0_0] : memref<16x32xf32, #tpu.memory_space<vmem>>, vector<16x32xf32>
    %c0_1 = arith.constant 0 : index
    %c0_2 = arith.constant 0 : index
    %1 = vector.load %arg3[%c0_1, %c0_2] : memref<32x128xf32, #tpu.memory_space<vmem>>, vector<32x128xf32>
    %cst = arith.constant dense<0.000000e+00> : vector<16x128xf32>
    %2 = tpu.matmul %0, %1, %cst {dimension_numbers = #tpu.dot_dimension_numbers<[1], [0], [0], [1], [0, 0, 1, 1], [], []>} : vector<16x32xf32>, vector<32x128xf32>, vector<16x128xf32> -> vector<16x128xf32>
    %c0_3 = arith.constant 0 : index
    %c0_4 = arith.constant 0 : index
    %3 = vector.load %arg4[%c0_3, %c0_4] : memref<1x128xf32, #tpu.memory_space<vmem>>, vector<1x128xf32>
    %4 = vector.broadcast %3 : vector<1x128xf32> to vector<16x128xf32>
    %5 = arith.addf %2, %4 : vector<16x128xf32>
    %cst_5 = arith.constant 4.471500e-02 : f32
    %6 = vector.broadcast %cst_5 : f32 to vector<16x128xf32>
    %7 = arith.mulf %6, %5 : vector<16x128xf32>
    %8 = arith.mulf %7, %5 : vector<16x128xf32>
    %9 = arith.mulf %8, %5 : vector<16x128xf32>
    %10 = arith.addf %5, %9 : vector<16x128xf32>
    %cst_6 = arith.constant 1.59576917 : f32
    %11 = vector.broadcast %cst_6 : f32 to vector<16x128xf32>
    %12 = arith.mulf %11, %10 : vector<16x128xf32>
    %13 = arith.negf %12 : vector<16x128xf32>
    %14 = math.exp %13 : vector<16x128xf32>
    %cst_7 = arith.constant 1.000000e+00 : f32
    %15 = vector.broadcast %cst_7 : f32 to vector<16x128xf32>
    %16 = arith.addf %15, %14 : vector<16x128xf32>
    %17 = arith.divf %15, %16 : vector<16x128xf32>
    %18 = arith.mulf %5, %17 : vector<16x128xf32>
    %c0_8 = arith.constant 0 : index
    %c0_9 = arith.constant 0 : index
    %19 = vector.load %arg5[%c0_8, %c0_9] : memref<128x32xf32, #tpu.memory_space<vmem>>, vector<128x32xf32>
    %cst_10 = arith.constant dense<0.000000e+00> : vector<16x32xf32>
    %20 = tpu.matmul %18, %19, %cst_10 {dimension_numbers = #tpu.dot_dimension_numbers<[1], [0], [0], [1], [0, 0, 1, 1], [], []>} : vector<16x128xf32>, vector<128x32xf32>, vector<16x32xf32> -> vector<16x32xf32>
    %c0_11 = arith.constant 0 : index
    %c0_12 = arith.constant 0 : index
    %21 = vector.load %arg6[%c0_11, %c0_12] : memref<1x32xf32, #tpu.memory_space<vmem>>, vector<1x32xf32>
    %22 = vector.broadcast %21 : vector<1x32xf32> to vector<16x32xf32>
    %23 = arith.addf %20, %22 : vector<16x32xf32>
    %c0_13 = arith.constant 0 : index
    %c0_14 = arith.constant 0 : index
    %24 = vector.load %arg7[%c0_13, %c0_14] : memref<16x32xf32, #tpu.memory_space<vmem>>, vector<16x32xf32>
    tpu.vector_store %arg7[%c0_13, %c0_14], %23 {strides = array<i32>} : memref<16x32xf32, #tpu.memory_space<vmem>>, vector<16x32xf32>,
    return
  }
  func.func @transform_0(%arg0: i32, %arg1: i32) -> (i32, i32) {
    %c0_i32 = arith.constant 0 : i32
    %c0_i32_0 = arith.constant 0 : i32
    return %arg0, %c0_i32 : i32, i32
  }
  func.func @transform_1(%arg0: i32, %arg1: i32) -> (i32, i32) {
    %c0_i32 = arith.constant 0 : i32
    %c0_i32_0 = arith.constant 0 : i32
    return %c0_i32, %arg1 : i32, i32
  }
  func.func @transform_2(%arg0: i32, %arg1: i32) -> (i32, i32) {
    %c0_i32 = arith.constant 0 : i32
    %c0_i32_0 = arith.constant 0 : i32
    return %c0_i32, %arg1 : i32, i32
  }
  func.func @transform_3(%arg0: i32, %arg1: i32) -> (i32, i32) {
    %c0_i32 = arith.constant 0 : i32
    %c0_i32_0 = arith.constant 0 : i32
    return %arg1, %c0_i32 : i32, i32
  }
  func.func @transform_4(%arg0: i32, %arg1: i32) -> (i32, i32) {
    %c0_i32 = arith.constant 0 : i32
    %c0_i32_0 = arith.constant 0 : i32
    %c0_i32_1 = arith.constant 0 : i32
    return %c0_i32, %c0_i32_0 : i32, i32
  }
  func.func @transform_5(%arg0: i32, %arg1: i32) -> (i32, i32) {
    %c0_i32 = arith.constant 0 : i32
    %c0_i32_0 = arith.constant 0 : i32
    return %arg0, %c0_i32 : i32, i32
  }
}

</mosaic_0001>

<llo_original>
// kernel: tpu_custom_call.1
$region0: #{tpu_custom_call.1}
  #allocation0 [shape = 'u32[]', space=smem, size = 0x4, offset = 0x4, fixed_abs, tag = 'smem constant byte address 0x4 - core index']
  #allocation1 [shape = 'u32[144,128]{1,0:T(1,128)}', space=vmem, size = 0x12000, scoped, tag = 'internal scratch']
  %s0 = inlined_call_operand.vmem [shape: f32[16,32], index: 0, kind: input, shape index: {}]
  %s1 = inlined_call_operand.vmem [shape: f32[32,128], index: 1, kind: input, shape index: {}]
  %s2 = inlined_call_operand.vmem [shape: f32[1,128], index: 2, kind: input, shape index: {}]
  %s3 = inlined_call_operand.vmem [shape: f32[128,32], index: 3, kind: input, shape index: {}]
  %s4 = inlined_call_operand.vmem [shape: f32[1,32], index: 4, kind: input, shape index: {}]
  %s5 = inlined_call_operand.hbm [shape: f32[16,32], index: 5, kind: output, shape index: {}]
  %s6 = sld [smem:[#allocation0]]
  $region30: #{tpu_custom_call.1} parent=0
    _
  %s8 = ssub.s32 1, %s6
  %s9 = scalar_select 0, %s8, %s6
  $region1: #{tpu_custom_call.1} parent=0
    #allocation2 [shape = 'u8[8192]{0}', space=vmem, size = 0x2000, scoped, tag = 'output window, operand 0, single buffered']
    #allocation3 [shape = 's32[1]{0}', space=sflag, size = 0x4, scoped, tag = 'scoped memory for tpu_custom_call.1']
    %10 = vsyncpa [#allocation3], 0
    // Predicated region
    $region2: #{tpu_custom_call.1} parent=1 // pred_check
      _
    $region3: #{tpu_custom_call.1} parent=1 // pred_check_branch
      %12 = sbr.rel (0) target = $region5
    $region4: #{tpu_custom_call.1} parent=1 // pred_region
      _
    $region5: #{tpu_custom_call.1} parent=1 // pred_fallthru
      _
    // Predicated region
    $region6: #{tpu_custom_call.1} parent=1 // pred_check
      _
    $region7: #{tpu_custom_call.1} parent=1 // pred_check_branch
      %14 = sbr.rel (0) target = $region9
    $region8: #{tpu_custom_call.1} parent=1 // pred_region
      _
    $region9: #{tpu_custom_call.1} parent=1 // pred_fallthru
      _
    // Predicated region
    $region10: #{tpu_custom_call.1} parent=1 // pred_check
      _
    $region11: #{tpu_custom_call.1} parent=1 // pred_check_branch
      %16 = sbr.rel (0) target = $region13
    $region12: #{tpu_custom_call.1} parent=1 // pred_region
      _
    $region13: #{tpu_custom_call.1} parent=1 // pred_fallthru
      _
    // Predicated region
    $region14: #{tpu_custom_call.1} parent=1 // pred_check
      _
    $region15: #{tpu_custom_call.1} parent=1 // pred_check_branch
      %18 = sbr.rel (0) target = $region17
    $region16: #{tpu_custom_call.1} parent=1 // pred_region
      _
    $region17: #{tpu_custom_call.1} parent=1 // pred_fallthru
      _
    // Predicated region
    $region18: #{tpu_custom_call.1} parent=1 // pred_check
      _
    $region19: #{tpu_custom_call.1} parent=1 // pred_check_branch
      %20 = sbr.rel (0) target = $region21
    $region20: #{tpu_custom_call.1} parent=1 // pred_region
      _
    $region21: #{tpu_custom_call.1} parent=1 // pred_fallthru
      _
    %v21 = vld [vmem:[%s0] sm:$0xff]
    %v22 = vld [vmem:[%s0 + $0x8] sm:$0xff]
    %v23 = vld [vmem:[%s1] sm:$0xff]
    %v24 = vld [vmem:[%s1 + $0x8] sm:$0xff]
    %v25 = vld [vmem:[%s1 + $0x10] sm:$0xff]
    %v26 = vld [vmem:[%s1 + $0x18] sm:$0xff]
    %v27 = vld [vmem:[%s2] sm:$0x1]
    %v29 = vlaneseq
    %v30 = vshrl.u32 %v29, 7
    %v31 = vsub.s32 0, %v30
    %v32 = vrot.slane %v27, %v31
    %vm34 = vcmask 261120
    %v36 = vsel %vm34, %v21, 0
    %v39 = vsel %vm34, %v22, 0
    %41 = vmatprep.subr.mxu0 0.0
    %42 = vmatpush1.msra.mxu0 0.0
    %43 = vmatprep.subr.mxu0 0.0
    %44 = vmatpush1.msra.mxu0 0.0
    %45 = vmatprep.subr.mxu0 0.0
    %46 = vmatpush1.msra.mxu0 0.0
    %47 = vmatprep.subr.mxu0 0.0
    %48 = vmatpush1.msra.mxu0 0.0
    %49 = vmatprep.subr.mxu0 0.0
    %50 = vmatpush1.msra.mxu0 0.0
    %51 = vmatprep.subr.mxu0 0.0
    %52 = vmatpush1.msra.mxu0 0.0
    %53 = vmatprep.subr.mxu0 0.0
    %54 = vmatpush1.msra.mxu0 0.0
    %55 = vmatprep.subr.mxu0 0.0
    %56 = vmatpush1.msra.mxu0 0.0
    %57 = vmatprep.subr.mxu0 0.0
    %58 = vmatpush1.msra.mxu0 0.0
    %59 = vmatprep.subr.mxu0 0.0
    %60 = vmatpush1.msra.mxu0 0.0
    %61 = vmatprep.subr.mxu0 0.0
    %62 = vmatpush1.msra.mxu0 0.0
    %63 = vmatprep.subr.mxu0 0.0
    %64 = vmatpush1.msra.mxu0 0.0
    %65 = vmatprep.subr.mxu0 0.0
    %66 = vmatpush1.msra.mxu0 %v26
    %67 = vmatprep.subr.mxu0 0.0
    %68 = vmatpush1.msra.mxu0 %v25
    %69 = vmatprep.subr.mxu0 0.0
    %70 = vmatpush1.msra.mxu0 %v24
    %71 = vmatprep.subr.mxu0 0.0
    %72 = vmatpush1.msra.mxu0 %v23
    %73 = vmatprep.subr.mxu0 0.0
    %74 = vmatpush2.msra.mxu0 0.0
    %75 = vmatprep.subr.mxu0 0.0
    %76 = vmatpush2.msra.mxu0 0.0
    %77 = vmatprep.subr.mxu0 0.0
    %78 = vmatpush2.msra.mxu0 0.0
    %79 = vmatprep.subr.mxu0 0.0
    %80 = vmatpush2.msra.mxu0 0.0
    %81 = vmatprep.subr.mxu0 0.0
    %82 = vmatpush2.msra.mxu0 0.0
    %83 = vmatprep.subr.mxu0 0.0
    %84 = vmatpush2.msra.mxu0 0.0
    %85 = vmatprep.subr.mxu0 0.0
    %86 = vmatpush2.msra.mxu0 0.0
    %87 = vmatprep.subr.mxu0 0.0
    %88 = vmatpush2.msra.mxu0 0.0
    %89 = vmatprep.subr.mxu0 0.0
    %90 = vmatpush2.msra.mxu0 0.0
    %91 = vmatprep.subr.mxu0 0.0
    %92 = vmatpush2.msra.mxu0 0.0
    %93 = vmatprep.subr.mxu0 0.0
    %94 = vmatpush2.msra.mxu0 0.0
    %95 = vmatprep.subr.mxu0 0.0
    %96 = vmatpush2.msra.mxu0 0.0
    %97 = vmatprep.subr.mxu0 0.0
    %98 = vmatpush2.msra.mxu0 0.0
    %99 = vmatprep.subr.mxu0 0.0
    %100 = vmatpush2.msra.mxu0 0.0
    %101 = vmatprep.subr.mxu0 0.0
    %102 = vmatpush2.msra.mxu0 0.0
    %103 = vmatprep.subr.mxu0 0.0
    %104 = vmatpush2.msra.mxu0 0.0
    %105 = vmatprep.mubr.f32.mxu0 0.0
    %106 = vmatmul.mubr.f32.gmra.mxu0 %v36
    %v107 = vpop.f32.mrf.mxu0
    %v108 = vadd.f32 %v32, %v107
    %v109 = vpop.f32.mrf.mxu0
    %110 = vmatprep.mubr.f32.mxu0 0.0
    %111 = vmatmul.mubr.f32.gmra.mxu0 %v39
    %v112 = vpop.f32.mrf.mxu0
    %v113 = vadd.f32 %v32, %v112
    %v114 = vpop.f32.mrf.mxu0
    %115 = vdwg.mxu0
    %v116 = vmul.f32 %v108, 0.044715
    %v117 = vmul.f32 %v113, 0.044715
    %v118 = vmul.f32 %v116, %v108
    %v119 = vmul.f32 %v117, %v113
    %v120 = vmul.f32 %v118, %v108
    %v121 = vmul.f32 %v119, %v113
    %v122 = vadd.f32 %v108, %v120
    %v123 = vadd.f32 %v113, %v121
    %v124 = vmul.f32 %v122, 1.5957692
    %v125 = vmul.f32 %v123, 1.5957692
    %v126 = vxor.u32 %v124, 2147483648
    %v127 = vxor.u32 %v125, 2147483648
    %v128 = vmul.f32 %v126, 1.442695
    %v129 = vpow.pop %v128
    %v130 = vmul.f32 %v127, 1.442695
    %v131 = vpow.pop %v130
    %v132 = vadd.f32 %v129, 1.0
    %v133 = vadd.f32 %v131, 1.0
    %v134 = vrcp.pop %v132
    %v135 = vmul.f32 1.0, %v134
    %v136 = vrcp.pop %v133
    %v137 = vmul.f32 1.0, %v136
    %v138 = vmul.f32 %v108, %v135
    %v139 = vmul.f32 %v113, %v137
    %v140 = vld [vmem:[%s3] sm:$0xff]
    %v141 = vld [vmem:[%s3 + $0x8] sm:$0xff]
    %v142 = vld [vmem:[%s3 + $0x10] sm:$0xff]
    %v143 = vld [vmem:[%s3 + $0x18] sm:$0xff]
    %v144 = vld [vmem:[%s3 + $0x20] sm:$0xff]
    %v145 = vld [vmem:[%s3 + $0x28] sm:$0xff]
    %v146 = vld [vmem:[%s3 + $0x30] sm:$0xff]
    %v147 = vld [vmem:[%s3 + $0x38] sm:$0xff]
    %v148 = vld [vmem:[%s3 + $0x40] sm:$0xff]
    %v149 = vld [vmem:[%s3 + $0x48] sm:$0xff]
    %v150 = vld [vmem:[%s3 + $0x50] sm:$0xff]
    %v151 = vld [vmem:[%s3 + $0x58] sm:$0xff]
    %v152 = vld [vmem:[%s3 + $0x60] sm:$0xff]
    %v153 = vld [vmem:[%s3 + $0x68] sm:$0xff]
    %v154 = vld [vmem:[%s3 + $0x70] sm:$0xff]
    %v155 = vld [vmem:[%s3 + $0x78] sm:$0xff]
    %v156 = vld [vmem:[%s4] sm:$0x1]
    %v158 = vlaneseq
    %v159 = vshrl.u32 %v158, 7
    %v160 = vsub.s32 0, %v159
    %v161 = vrot.slane %v156, %v160
    %163 = vmatprep.subr.mxu0 0.0
    %164 = vmatpush1.msra.mxu0 %v155
    %165 = vmatprep.subr.mxu0 0.0
    %166 = vmatpush1.msra.mxu0 %v154
    %167 = vmatprep.subr.mxu0 0.0
    %168 = vmatpush1.msra.mxu0 %v153
    %169 = vmatprep.subr.mxu0 0.0
    %170 = vmatpush1.msra.mxu0 %v152
    %171 = vmatprep.subr.mxu0 0.0
    %172 = vmatpush1.msra.mxu0 %v151
    %173 = vmatprep.subr.mxu0 0.0
    %174 = vmatpush1.msra.mxu0 %v150
    %175 = vmatprep.subr.mxu0 0.0
    %176 = vmatpush1.msra.mxu0 %v149
    %177 = vmatprep.subr.mxu0 0.0
    %178 = vmatpush1.msra.mxu0 %v148
    %179 = vmatprep.subr.mxu0 0.0
    %180 = vmatpush1.msra.mxu0 %v147
    %181 = vmatprep.subr.mxu0 0.0
    %182 = vmatpush1.msra.mxu0 %v146
    %183 = vmatprep.subr.mxu0 0.0
    %184 = vmatpush1.msra.mxu0 %v145
    %185 = vmatprep.subr.mxu0 0.0
    %186 = vmatpush1.msra.mxu0 %v144
    %187 = vmatprep.subr.mxu0 0.0
    %188 = vmatpush1.msra.mxu0 %v143
    %189 = vmatprep.subr.mxu0 0.0
    %190 = vmatpush1.msra.mxu0 %v142
    %191 = vmatprep.subr.mxu0 0.0
    %192 = vmatpush1.msra.mxu0 %v141
    %193 = vmatprep.subr.mxu0 0.0
    %194 = vmatpush1.msra.mxu0 %v140
    %195 = vmatprep.subr.mxu0 0.0
    %196 = vmatpush2.msra.mxu0 0.0
    %197 = vmatprep.subr.mxu0 0.0
    %198 = vmatpush2.msra.mxu0 0.0
    %199 = vmatprep.subr.mxu0 0.0
    %200 = vmatpush2.msra.mxu0 0.0
    %201 = vmatprep.subr.mxu0 0.0
    %202 = vmatpush2.msra.mxu0 0.0
    %203 = vmatprep.subr.mxu0 0.0
    %204 = vmatpush2.msra.mxu0 0.0
    %205 = vmatprep.subr.mxu0 0.0
    %206 = vmatpush2.msra.mxu0 0.0
    %207 = vmatprep.subr.mxu0 0.0
    %208 = vmatpush2.msra.mxu0 0.0
    %209 = vmatprep.subr.mxu0 0.0
    %210 = vmatpush2.msra.mxu0 0.0
    %211 = vmatprep.subr.mxu0 0.0
    %212 = vmatpush2.msra.mxu0 0.0
    %213 = vmatprep.subr.mxu0 0.0
    %214 = vmatpush2.msra.mxu0 0.0
    %215 = vmatprep.subr.mxu0 0.0
    %216 = vmatpush2.msra.mxu0 0.0
    %217 = vmatprep.subr.mxu0 0.0
    %218 = vmatpush2.msra.mxu0 0.0
    %219 = vmatprep.subr.mxu0 0.0
    %220 = vmatpush2.msra.mxu0 0.0
    %221 = vmatprep.subr.mxu0 0.0
    %222 = vmatpush2.msra.mxu0 0.0
    %223 = vmatprep.subr.mxu0 0.0
    %224 = vmatpush2.msra.mxu0 0.0
    %225 = vmatprep.subr.mxu0 0.0
    %226 = vmatpush2.msra.mxu0 0.0
    %227 = vmatprep.mubr.f32.mxu0 0.0
    %228 = vmatmul.mubr.f32.gmra.mxu0 %v138
    %v229 = vpop.f32.mrf.mxu0
    %v230 = vadd.f32 %v161, %v229
    %v231 = vpop.f32.mrf.mxu0
    %232 = vmatprep.mubr.f32.mxu0 0.0
    %233 = vmatmul.mubr.f32.gmra.mxu0 %v139
    %v234 = vpop.f32.mrf.mxu0
    %v235 = vadd.f32 %v161, %v234
    %v236 = vpop.f32.mrf.mxu0
    %237 = vdwg.mxu0
    %238 = vst.msk [vmem:[#allocation2] sm:$0xff] %vm34, %v230
    %239 = vst.msk [vmem:[#allocation2 + $0x8] sm:$0xff] %vm34, %v235
    // Predicated region
    $region22: #{tpu_custom_call.1} parent=1 // pred_check
      _
    $region23: #{tpu_custom_call.1} parent=1 // pred_check_branch
      %241 = sbr.rel (0) target = $region25
    $region24: #{tpu_custom_call.1} parent=1 // pred_region
      %s243 = ssub.s32 256, 256
      %244 = vsyncadd [#allocation3], %s243
      %s245 = sshll.u32 [#allocation2], 4
      %s246 = int_to_ptr.vmem [resolvable:$true] %s245
      %251 = dma.vmem_to_hbm [thread:$0]  %s246, 256, %s5, [#allocation3], 128, 128, 8
    $region25: #{tpu_custom_call.1} parent=1 // pred_fallthru
      _
    // Predicated region
    $region26: #{tpu_custom_call.1} parent=1 // pred_check
      _
    $region27: #{tpu_custom_call.1} parent=1 // pred_check_branch
      %253 = sbr.rel (0) target = $region29
    $region28: #{tpu_custom_call.1} parent=1 // pred_region
      %254 = dma.done [#allocation3], 256
    $region29: #{tpu_custom_call.1} parent=1 // pred_fallthru
      _
    %255 = vsyncpa [#allocation3], 1

</llo_original>
